<compile_context>
chip_gen: v6e
topology: v6e:2x2x1
jax: 0.10.0
libtpu: 0.0.40
codegen_flags: <defaults>
</compile_context>

<pallas_src>
import functools

import jax
import jax.numpy as jnp
import numpy as np
from jax import lax
from jax.experimental import pallas as pl
from jax.experimental.pallas import tpu as pltpu

IN_NC = 3
OUT_NC = 3
BASE_NF = 64
COND_NF = 32


# ----------------------------------------------------------------------------
# Pallas kernel: fused (1x1 conv with folded FiLM -> ReLU) x3, channels-first
# ----------------------------------------------------------------------------
def _csrnet_main_kernel(x_ref, w1_ref, b1_ref, w2_ref, b2_ref, w3_ref, b3_ref,
                        o_ref, *, chunk):
    w1 = w1_ref[0]   # (BASE_NF, IN_NC)   per-batch effective weight
    b1 = b1_ref[0]   # (BASE_NF, 1)       per-batch effective bias
    w2 = w2_ref[0]   # (BASE_NF, BASE_NF)
    b2 = b2_ref[0]   # (BASE_NF, 1)
    w3 = w3_ref[0]   # (OUT_NC, BASE_NF)
    b3 = b3_ref[0]   # (OUT_NC, 1)

    n_chunks = x_ref.shape[2] // chunk

    def body(c, carry):
        start = pl.multiple_of(c * chunk, chunk)
        x = x_ref[0, :, pl.ds(start, chunk)]                       # (IN_NC, chunk)

        h = jnp.dot(w1, x, preferred_element_type=jnp.float32) + b1
        h = jnp.maximum(h, 0.0)                                    # (BASE_NF, chunk)

        h = jnp.dot(w2, h, preferred_element_type=jnp.float32) + b2
        h = jnp.maximum(h, 0.0)

        h = jnp.dot(w3, h, preferred_element_type=jnp.float32) + b3
        o_ref[0, :, pl.ds(start, chunk)] = h                       # (OUT_NC, chunk)
        return carry

    lax.fori_loop(0, n_chunks, body, 0, unroll=True)


def csrnet_main_pallas(x_bcp, w1e, b1e, w2e, b2e, w3e, b3e, tile_pixels=512):
    """x_bcp: (B, IN_NC, P) f32.  Per-batch effective weights/biases:
       w1e (B,64,3), b1e (B,64,1), w2e (B,64,64), b2e (B,64,1),
       w3e (B,3,64),  b3e (B,3,1).  Returns (B, OUT_NC, P)."""
    B, Cin, P = x_bcp.shape
    assert Cin == IN_NC

    # Pick a lane-dense tile: multiple of 128, no bigger than the padded image.
    p128 = pl.cdiv(P, 128) * 128
    tp = min(int(tile_pixels), p128)
    tp = max(128, (tp // 128) * 128)
    p_pad = pl.cdiv(P, tp) * tp
    if p_pad != P:
        x_bcp = jnp.pad(x_bcp, ((0, 0), (0, 0), (0, p_pad - P)))
    chunk = 256 if tp % 256 == 0 else 128

    grid = (B, p_pad // tp)

    def per_batch(shape):
        return pl.BlockSpec(shape, lambda b, p: (b, 0, 0))

    in_specs = [
        pl.BlockSpec((1, IN_NC, tp), lambda b, p: (b, 0, p)),       # x tile
        per_batch((1, BASE_NF, IN_NC)), per_batch((1, BASE_NF, 1)),  # w1', b1'
        per_batch((1, BASE_NF, BASE_NF)), per_batch((1, BASE_NF, 1)),  # w2', b2'
        per_batch((1, OUT_NC, BASE_NF)), per_batch((1, OUT_NC, 1)),  # w3', b3'
    ]
    out_spec = pl.BlockSpec((1, OUT_NC, tp), lambda b, p: (b, 0, p))

    out = pl.pallas_call(
        functools.partial(_csrnet_main_kernel, chunk=chunk),
        out_shape=jax.ShapeDtypeStruct((B, p_pad, OUT_NC)[:1] + (OUT_NC, p_pad),
                                       jnp.float32),
        grid_spec=pltpu.PrefetchScalarGridSpec(
            num_scalar_prefetch=0,
            grid=grid,
            in_specs=in_specs,
            out_specs=out_spec,
        ),
        compiler_params=pltpu.CompilerParams(
            dimension_semantics=("parallel", "parallel")),
    )(x_bcp, w1e, b1e, w2e, b2e, w3e, b3e)

    if p_pad != P:
        out = out[:, :, :P]
    return out


# ----------------------------------------------------------------------------
# Condition branch (plain JAX glue — tiny, downsampled side branch)
# ----------------------------------------------------------------------------
# TODO(synk): strided 7x7/3x3 condition convs kept in plain JAX (lax.conv);
# they run at heavily downsampled resolution and are not the hot path.
def _zero_pad1(x):
    return jnp.pad(x, ((0, 0), (0, 0), (1, 1), (1, 1)))


def _conv_nchw(x, w, b, stride):
    y = lax.conv_general_dilated(
        x, w, window_strides=(stride, stride), padding='VALID',
        dimension_numbers=('NCHW', 'OIHW', 'NCHW'))
    return y + b[None, :, None, None]


def condition_net(x, p):
    h = jax.nn.relu(_conv_nchw(_zero_pad1(x), p['cond_c1_w'], p['cond_c1_b'], 2))
    h = jax.nn.relu(_conv_nchw(_zero_pad1(h), p['cond_c2_w'], p['cond_c2_b'], 2))
    h = jax.nn.relu(_conv_nchw(_zero_pad1(h), p['cond_c3_w'], p['cond_c3_b'], 2))
    return jnp.mean(h, axis=(2, 3))                              # (B, COND_NF)


def _linear(x, w, b):          # PyTorch nn.Linear: y = x @ W.T + b
    return x @ w.T + b


# ----------------------------------------------------------------------------
# Full forward
# ----------------------------------------------------------------------------
def csrnet_forward(x_nchw, p, tile_pixels=512):
    B, C, H, W = x_nchw.shape
    cond = condition_net(x_nchw, p)

    scale1 = _linear(cond, p['cond_scale1_w'], p['cond_scale1_b'])  # (B, 64)
    shift1 = _linear(cond, p['cond_shift1_w'], p['cond_shift1_b'])
    scale2 = _linear(cond, p['cond_scale2_w'], p['cond_scale2_b'])
    shift2 = _linear(cond, p['cond_shift2_w'], p['cond_shift2_b'])
    scale3 = _linear(cond, p['cond_scale3_w'], p['cond_scale3_b'])  # (B, 3)
    shift3 = _linear(cond, p['cond_shift3_w'], p['cond_shift3_b'])

    # 1x1 conv weights (O, I, 1, 1) -> (O, I)  (channels-first matmul form)
    w1 = p['conv1_w'][:, :, 0, 0]
    w2 = p['conv2_w'][:, :, 0, 0]
    w3 = p['conv3_w'][:, :, 0, 0]

    # Fold FiLM: (Wx + b)*(1+s) + t == (W*(1+s)) x + (b*(1+s) + t)
    g1, g2, g3 = 1.0 + scale1, 1.0 + scale2, 1.0 + scale3
    w1e = w1[None] * g1[:, :, None]                                # (B, 64, 3)
    b1e = (p['conv1_b'][None] * g1 + shift1)[:, :, None]           # (B, 64, 1)
    w2e = w2[None] * g2[:, :, None]                                # (B, 64, 64)
    b2e = (p['conv2_b'][None] * g2 + shift2)[:, :, None]
    w3e = w3[None] * g3[:, :, None]                                # (B, 3, 64)
    b3e = (p['conv3_b'][None] * g3 + shift3)[:, :, None]

    x_bcp = x_nchw.reshape(B, C, H * W)          # native NCHW — no transpose
    out_bcp = csrnet_main_pallas(x_bcp, w1e, b1e, w2e, b2e, w3e, b3e,
                                 tile_pixels=tile_pixels)
    return out_bcp.reshape(B, OUT_NC, H, W)


def csrnet_forward_reference(x_nchw, p):
    """Pure-JAX reference mirroring the PyTorch module (for correctness)."""
    cond = condition_net(x_nchw, p)
    scale1 = _linear(cond, p['cond_scale1_w'], p['cond_scale1_b'])
    shift1 = _linear(cond, p['cond_shift1_w'], p['cond_shift1_b'])
    scale2 = _linear(cond, p['cond_scale2_w'], p['cond_scale2_b'])
    shift2 = _linear(cond, p['cond_shift2_w'], p['cond_shift2_b'])
    scale3 = _linear(cond, p['cond_scale3_w'], p['cond_scale3_b'])
    shift3 = _linear(cond, p['cond_shift3_w'], p['cond_shift3_b'])

    def conv1x1(x, w, b):
        return jnp.einsum('oi,bihw->bohw', w[:, :, 0, 0], x) + b[None, :, None, None]

    out = conv1x1(x_nchw, p['conv1_w'], p['conv1_b'])
    out = out * scale1[:, :, None, None] + shift1[:, :, None, None] + out
    out = jax.nn.relu(out)
    out = conv1x1(out, p['conv2_w'], p['conv2_b'])
    out = out * scale2[:, :, None, None] + shift2[:, :, None, None] + out
    out = jax.nn.relu(out)
    out = conv1x1(out, p['conv3_w'], p['conv3_b'])
    out = out * scale3[:, :, None, None] + shift3[:, :, None, None] + out
    return out


# ----------------------------------------------------------------------------
# Deterministic parameter init (synthetic weights, not a checkpoint)
# ----------------------------------------------------------------------------
def init_params(key):
    shapes = {
        'cond_c1_w': (COND_NF, IN_NC, 7, 7), 'cond_c1_b': (COND_NF,),
        'cond_c2_w': (COND_NF, COND_NF, 3, 3), 'cond_c2_b': (COND_NF,),
        'cond_c3_w': (COND_NF, COND_NF, 3, 3), 'cond_c3_b': (COND_NF,),
        'cond_scale1_w': (BASE_NF, COND_NF), 'cond_scale1_b': (BASE_NF,),
        'cond_scale2_w': (BASE_NF, COND_NF), 'cond_scale2_b': (BASE_NF,),
        'cond_scale3_w': (OUT_NC, COND_NF), 'cond_scale3_b': (OUT_NC,),
        'cond_shift1_w': (BASE_NF, COND_NF), 'cond_shift1_b': (BASE_NF,),
        'cond_shift2_w': (BASE_NF, COND_NF), 'cond_shift2_b': (BASE_NF,),
        'cond_shift3_w': (OUT_NC, COND_NF), 'cond_shift3_b': (OUT_NC,),
        'conv1_w': (BASE_NF, IN_NC, 1, 1), 'conv1_b': (BASE_NF,),
        'conv2_w': (BASE_NF, BASE_NF, 1, 1), 'conv2_b': (BASE_NF,),
        'conv3_w': (OUT_NC, BASE_NF, 1, 1), 'conv3_b': (OUT_NC,),
    }
    params = {}
    keys = jax.random.split(key, len(shapes))
    for (name, shape), k in zip(sorted(shapes.items()), keys):
        params[name] = (0.1 * jax.random.normal(k, shape)).astype(jnp.float32)
    return params


if __name__ == "__main__":
    key = jax.random.PRNGKey(0)
    pkey, xkey, xkey2 = jax.random.split(key, 3)
    params = init_params(pkey)

    # Test 1: tile-aligned pixel count (H*W multiple of 128)
    B, C, H, W = 2, IN_NC, 16, 16
    x = jax.random.normal(xkey, (B, C, H, W), dtype=jnp.float32)
    out = jax.block_until_ready(csrnet_forward(x, params))
    assert out.shape == (B, OUT_NC, H, W), out.shape
    ref = jax.block_until_ready(csrnet_forward_reference(x, params))
    np.testing.assert_allclose(np.asarray(out), np.asarray(ref),
                               rtol=1e-2, atol=1e-2)

    # Test 2: ragged pixel count (exercises the padding path)
    H2, W2 = 10, 14
    x2 = jax.random.normal(xkey2, (B, C, H2, W2), dtype=jnp.float32)
    out2 = jax.block_until_ready(csrnet_forward(x2, params))
    assert out2.shape == (B, OUT_NC, H2, W2), out2.shape
    ref2 = jax.block_until_ready(csrnet_forward_reference(x2, params))
    np.testing.assert_allclose(np.asarray(out2), np.asarray(ref2),
                               rtol=1e-2, atol=1e-2)

    print("KERNEL_OK")
</pallas_src>

<mosaic_0001>
module attributes {stable_mosaic.version = 11 : i64} {
  func.func @_csrnet_main_kernel(%arg0: i32, %arg1: i32, %arg2: memref<1x3x256xf32, #tpu.memory_space<vmem>>, %arg3: memref<1x64x3xf32, #tpu.memory_space<vmem>>, %arg4: memref<1x64x1xf32, #tpu.memory_space<vmem>>, %arg5: memref<1x64x64xf32, #tpu.memory_space<vmem>>, %arg6: memref<1x64x1xf32, #tpu.memory_space<vmem>>, %arg7: memref<1x3x64xf32, #tpu.memory_space<vmem>>, %arg8: memref<1x3x1xf32, #tpu.memory_space<vmem>>, %arg9: memref<1x3x256xf32, #tpu.memory_space<vmem>>) attributes {dimension_semantics = [#tpu.dimension_semantics<parallel>, #tpu.dimension_semantics<parallel>], iteration_bounds = array<i64: 2, 1>, scalar_prefetch = 0 : i64, scratch_operands = 0 : i64, tpu.core_type = #tpu.core_type<tc>, window_params = [{transform_indices = @transform_0, window_bounds = array<i64: 1, 3, 256>}, {transform_indices = @transform_1, window_bounds = array<i64: 1, 64, 3>}, {transform_indices = @transform_2, window_bounds = array<i64: 1, 64, 1>}, {transform_indices = @transform_3, window_bounds = array<i64: 1, 64, 64>}, {transform_indices = @transform_4, window_bounds = array<i64: 1, 64, 1>}, {transform_indices = @transform_5, window_bounds = array<i64: 1, 3, 64>}, {transform_indices = @transform_6, window_bounds = array<i64: 1, 3, 1>}, {transform_indices = @transform_7, window_bounds = array<i64: 1, 3, 256>}]} {
    %c0 = arith.constant 0 : index
    %c0_0 = arith.constant 0 : index
    %c0_1 = arith.constant 0 : index
    %0 = vector.load %arg3[%c0, %c0_0, %c0_1] : memref<1x64x3xf32, #tpu.memory_space<vmem>>, vector<1x64x3xf32>
    %1 = vector.shape_cast %0 : vector<1x64x3xf32> to vector<64x3xf32>
    %c0_2 = arith.constant 0 : index
    %c0_3 = arith.constant 0 : index
    %c0_4 = arith.constant 0 : index
    %2 = vector.load %arg4[%c0_2, %c0_3, %c0_4] : memref<1x64x1xf32, #tpu.memory_space<vmem>>, vector<1x64x1xf32>
    %3 = vector.shape_cast %2 : vector<1x64x1xf32> to vector<64x1xf32>
    %c0_5 = arith.constant 0 : index
    %c0_6 = arith.constant 0 : index
    %c0_7 = arith.constant 0 : index
    %4 = vector.load %arg5[%c0_5, %c0_6, %c0_7] : memref<1x64x64xf32, #tpu.memory_space<vmem>>, vector<1x64x64xf32>
    %5 = vector.shape_cast %4 : vector<1x64x64xf32> to vector<64x64xf32>
    %c0_8 = arith.constant 0 : index
    %c0_9 = arith.constant 0 : index
    %c0_10 = arith.constant 0 : index
    %6 = vector.load %arg6[%c0_8, %c0_9, %c0_10] : memref<1x64x1xf32, #tpu.memory_space<vmem>>, vector<1x64x1xf32>
    %7 = vector.shape_cast %6 : vector<1x64x1xf32> to vector<64x1xf32>
    %c0_11 = arith.constant 0 : index
    %c0_12 = arith.constant 0 : index
    %c0_13 = arith.constant 0 : index
    %8 = vector.load %arg7[%c0_11, %c0_12, %c0_13] : memref<1x3x64xf32, #tpu.memory_space<vmem>>, vector<1x3x64xf32>
    %9 = vector.shape_cast %8 : vector<1x3x64xf32> to vector<3x64xf32>
    %c0_14 = arith.constant 0 : index
    %c0_15 = arith.constant 0 : index
    %c0_16 = arith.constant 0 : index
    %10 = vector.load %arg8[%c0_14, %c0_15, %c0_16] : memref<1x3x1xf32, #tpu.memory_space<vmem>>, vector<1x3x1xf32>
    %11 = vector.shape_cast %10 : vector<1x3x1xf32> to vector<3x1xf32>
    %c0_i32 = arith.constant 0 : i32
    %c256_i32 = arith.constant 256 : i32
    %12 = arith.muli %c0_i32, %c256_i32 : i32
    %13 = tpu.assume_multiple %12, 256 : i32
    %c0_17 = arith.constant 0 : index
    %c0_18 = arith.constant 0 : index
    %14 = arith.index_cast %13 : i32 to index
    %15 = vector.load %arg2[%c0_17, %c0_18, %14] : memref<1x3x256xf32, #tpu.memory_space<vmem>>, vector<1x3x256xf32>
    %16 = vector.shape_cast %15 : vector<1x3x256xf32> to vector<3x256xf32>
    %cst = arith.constant dense<0.000000e+00> : vector<64x256xf32>
    %17 = tpu.matmul %1, %16, %cst {dimension_numbers = #tpu.dot_dimension_numbers<[1], [0], [0], [1], [0, 0, 1, 1], [], []>} : vector<64x3xf32>, vector<3x256xf32>, vector<64x256xf32> -> vector<64x256xf32>
    %18 = vector.broadcast %3 : vector<64x1xf32> to vector<64x256xf32>
    %19 = arith.addf %17, %18 : vector<64x256xf32>
    %cst_19 = arith.constant 0.000000e+00 : f32
    %20 = vector.broadcast %cst_19 : f32 to vector<64x256xf32>
    %21 = arith.maximumf %19, %20 : vector<64x256xf32>
    %cst_20 = arith.constant dense<0.000000e+00> : vector<64x256xf32>
    %22 = tpu.matmul %5, %21, %cst_20 {dimension_numbers = #tpu.dot_dimension_numbers<[1], [0], [0], [1], [0, 0, 1, 1], [], []>} : vector<64x64xf32>, vector<64x256xf32>, vector<64x256xf32> -> vector<64x256xf32>
    %23 = vector.broadcast %7 : vector<64x1xf32> to vector<64x256xf32>
    %24 = arith.addf %22, %23 : vector<64x256xf32>
    %cst_21 = arith.constant 0.000000e+00 : f32
    %25 = vector.broadcast %cst_21 : f32 to vector<64x256xf32>
    %26 = arith.maximumf %24, %25 : vector<64x256xf32>
    %cst_22 = arith.constant dense<0.000000e+00> : vector<3x256xf32>
    %27 = tpu.matmul %9, %26, %cst_22 {dimension_numbers = #tpu.dot_dimension_numbers<[1], [0], [0], [1], [0, 0, 1, 1], [], []>} : vector<3x64xf32>, vector<64x256xf32>, vector<3x256xf32> -> vector<3x256xf32>
    %28 = vector.broadcast %11 : vector<3x1xf32> to vector<3x256xf32>
    %29 = arith.addf %27, %28 : vector<3x256xf32>
    %c0_23 = arith.constant 0 : index
    %c0_24 = arith.constant 0 : index
    %30 = arith.index_cast %13 : i32 to index
    %31 = vector.load %arg9[%c0_23, %c0_24, %30] : memref<1x3x256xf32, #tpu.memory_space<vmem>>, vector<1x3x256xf32>
    %32 = vector.shape_cast %31 : vector<1x3x256xf32> to vector<3x256xf32>
    %33 = vector.shape_cast %29 : vector<3x256xf32> to vector<1x3x256xf32>
    tpu.vector_store %arg9[%c0_23, %c0_24, %30], %33 {strides = array<i32>} : memref<1x3x256xf32, #tpu.memory_space<vmem>>, vector<1x3x256xf32>,
    %c1_i32 = arith.constant 1 : i32
    return
  }
  func.func @transform_0(%arg0: i32, %arg1: i32) -> (i32, i32, i32) {
    %c0_i32 = arith.constant 0 : i32
    %c0_i32_0 = arith.constant 0 : i32
    return %arg0, %c0_i32, %arg1 : i32, i32, i32
  }
  func.func @transform_1(%arg0: i32, %arg1: i32) -> (i32, i32, i32) {
    %c0_i32 = arith.constant 0 : i32
    %c0_i32_0 = arith.constant 0 : i32
    %c0_i32_1 = arith.constant 0 : i32
    return %arg0, %c0_i32, %c0_i32_0 : i32, i32, i32
  }
  func.func @transform_2(%arg0: i32, %arg1: i32) -> (i32, i32, i32) {
    %c0_i32 = arith.constant 0 : i32
    %c0_i32_0 = arith.constant 0 : i32
    %c0_i32_1 = arith.constant 0 : i32
    return %arg0, %c0_i32, %c0_i32_0 : i32, i32, i32
  }
  func.func @transform_3(%arg0: i32, %arg1: i32) -> (i32, i32, i32) {
    %c0_i32 = arith.constant 0 : i32
    %c0_i32_0 = arith.constant 0 : i32
    %c0_i32_1 = arith.constant 0 : i32
    return %arg0, %c0_i32, %c0_i32_0 : i32, i32, i32
  }
  func.func @transform_4(%arg0: i32, %arg1: i32) -> (i32, i32, i32) {
    %c0_i32 = arith.constant 0 : i32
    %c0_i32_0 = arith.constant 0 : i32
    %c0_i32_1 = arith.constant 0 : i32
    return %arg0, %c0_i32, %c0_i32_0 : i32, i32, i32
  }
  func.func @transform_5(%arg0: i32, %arg1: i32) -> (i32, i32, i32) {
    %c0_i32 = arith.constant 0 : i32
    %c0_i32_0 = arith.constant 0 : i32
    %c0_i32_1 = arith.constant 0 : i32
    return %arg0, %c0_i32, %c0_i32_0 : i32, i32, i32
  }
  func.func @transform_6(%arg0: i32, %arg1: i32) -> (i32, i32, i32) {
    %c0_i32 = arith.constant 0 : i32
    %c0_i32_0 = arith.constant 0 : i32
    %c0_i32_1 = arith.constant 0 : i32
    return %arg0, %c0_i32, %c0_i32_0 : i32, i32, i32
  }
  func.func @transform_7(%arg0: i32, %arg1: i32) -> (i32, i32, i32) {
    %c0_i32 = arith.constant 0 : i32
    %c0_i32_0 = arith.constant 0 : i32
    return %arg0, %c0_i32, %arg1 : i32, i32, i32
  }
}

</mosaic_0001>

<llo_original>
// kernel: tpu_custom_call.1
$region0: #{tpu_custom_call.1}
  #allocation0 [shape = 'u32[]', space=smem, size = 0x4, offset = 0x4, fixed_abs, tag = 'smem constant byte address 0x4 - core index']
  #allocation1 [shape = 'u32[144,128]{1,0:T(1,128)}', space=vmem, size = 0x12000, scoped, tag = 'internal scratch']
  %s0 = inlined_call_operand.vmem [shape: f32[2,3,256], index: 0, kind: input, shape index: {}]
  %s1 = inlined_call_operand.vmem [shape: f32[2,64,3], index: 1, kind: input, shape index: {}]
  %s2 = inlined_call_operand.vmem [shape: f32[2,64,1], index: 2, kind: input, shape index: {}]
  %s3 = inlined_call_operand.vmem [shape: f32[2,64,64], index: 3, kind: input, shape index: {}]
  %s4 = inlined_call_operand.vmem [shape: f32[2,64,1], index: 4, kind: input, shape index: {}]
  %s5 = inlined_call_operand.vmem [shape: f32[2,3,64], index: 5, kind: input, shape index: {}]
  %s6 = inlined_call_operand.vmem [shape: f32[2,3,1], index: 6, kind: input, shape index: {}]
  %s7 = inlined_call_operand.vmem [shape: f32[2,3,256], index: 7, kind: output, shape index: {}]
  %s8 = sld [smem:[#allocation0]]
  $region61: #{tpu_custom_call.1} parent=0
    _
  %s10 = ssub.s32 1, %s8
  %s11 = scalar_select 0, %s10, %s8
  loop: start=0, step=1, limit=4
  $region2: #{tpu_custom_call.1} parent=0 // loop_pre_header
    _
  $region3: #{tpu_custom_call.1} parent=0 // loop_header
    %s13 = sphi 0, %s17
    %p14 = scmp.ge.s32.totalorder %s13, 4
    %s20 = sphi 0, %s32
    %s21 = sphi 0, %s28
    %s22 = sphi 0, %s20
    %s23 = sphi 0, %s21
    %s24 = sphi 0, %s22
    %s25 = sphi 0, %s23
    %s37 = sphi 0, %s39
    %s40 = sphi 0, %s37
    %s41 = sphi 0, %s40
    %s57 = sphi 0, %s41
    %s63 = sphi 0, %s65
    %s66 = sphi 0, %s63
    %s67 = sphi 0, %s66
    %s83 = sphi 0, %s67
    %s89 = sphi 0, %s91
    %s92 = sphi 0, %s89
    %s93 = sphi 0, %s92
    %s109 = sphi 0, %s93
    %s115 = sphi 0, %s117
    %s118 = sphi 0, %s115
    %s119 = sphi 0, %s118
    %s135 = sphi 0, %s119
    %s141 = sphi 0, %s143
    %s144 = sphi 0, %s141
    %s145 = sphi 0, %s144
    %s161 = sphi 0, %s145
    %s167 = sphi 0, %s169
    %s170 = sphi 0, %s167
    %s171 = sphi 0, %s170
    %s187 = sphi 0, %s171
    %s193 = sphi 0, %s195
    %s196 = sphi 0, %s193
    %s197 = sphi 0, %s196
    %s213 = sphi 0, %s197
    %s221 = sphi 0, %s223
    %s224 = sphi 0, %s221
    %s225 = sphi 0, %s224
    %s241 = sphi 0, %s225
  $region4: #{tpu_custom_call.1} parent=0 // loop_header_branch
    %16 = sbr.rel (%p14) target = $region8
  $region5: #{tpu_custom_call.1} parent=0 // loop_body
    %s18 = ssub.s32 %s13, 1
    %s19 = ssub.s32 %s13, 2
    %s26 = sadd.s32 1, %s21
    %p27 = scmp.ge.s32.totalorder %s26, 1
    %s28 = scalar_select %p27, 0, %s26
    %s29 = sadd.s32 1, %s20
    %s30 = scalar_select %p27, %s29, %s20
    %p31 = scmp.ge.s32.totalorder %s30, 2
    %s32 = scalar_select %p31, 0, %s30
    %s33 = ssub.s32 %s20, %s32
    %s34 = ssub.s32 %s21, %s28
    %s35 = sor.u32 %s33, %s34
    %p36 = scmp.eq.s32.totalorder %s35, 0
    %s38 = sadd.s32 %s37, 1
    %s39 = scalar_select %p36, %s37, %s38
    %p42 = pneg %p36
    %p43 = scmp.eq.s32.totalorder %s13, 1
    %p44 = por %p42, %p43
    %p45 = scmp.ne.s32.totalorder %s37, %s40
    %p46 = scmp.eq.s32.totalorder %s13, 0
    %p47 = por %p45, %p46
    %p48 = scmp.ne.s32.totalorder %s37, %s40
    %p49 = scmp.eq.s32.totalorder %s18, 1
    %p50 = por %p48, %p49
    %p51 = scmp.ne.s32.totalorder %s40, %s41
    %p52 = scmp.eq.s32.totalorder %s18, 0
    %p53 = por %p51, %p52
    %p54 = scmp.ne.s32.totalorder %s40, %s41
    %p55 = scmp.eq.s32.totalorder %s19, 1
    %p56 = por %p54, %p55
    %p58 = scmp.ne.s32.totalorder %s41, %s57
    %p59 = scmp.eq.s32.totalorder %s19, 0
    %p60 = por %p58, %p59
    %s61 = ssub.s32 %s20, %s32
    %p62 = scmp.eq.s32.totalorder %s61, 0
    %s64 = sadd.s32 %s63, 1
    %s65 = scalar_select %p62, %s63, %s64
    %p68 = pneg %p62
    %p69 = scmp.eq.s32.totalorder %s13, 1
    %p70 = por %p68, %p69
    %p71 = scmp.ne.s32.totalorder %s63, %s66
    %p72 = scmp.eq.s32.totalorder %s13, 0
    %p73 = por %p71, %p72
    %p74 = scmp.ne.s32.totalorder %s63, %s66
    %p75 = scmp.eq.s32.totalorder %s18, 1
    %p76 = por %p74, %p75
    %p77 = scmp.ne.s32.totalorder %s66, %s67
    %p78 = scmp.eq.s32.totalorder %s18, 0
    %p79 = por %p77, %p78
    %p80 = scmp.ne.s32.totalorder %s66, %s67
    %p81 = scmp.eq.s32.totalorder %s19, 1
    %p82 = por %p80, %p81
    %p84 = scmp.ne.s32.totalorder %s67, %s83
    %p85 = scmp.eq.s32.totalorder %s19, 0
    %p86 = por %p84, %p85
    %s87 = ssub.s32 %s20, %s32
    %p88 = scmp.eq.s32.totalorder %s87, 0
    %s90 = sadd.s32 %s89, 1
    %s91 = scalar_select %p88, %s89, %s90
    %p94 = pneg %p88
    %p95 = scmp.eq.s32.totalorder %s13, 1
    %p96 = por %p94, %p95
    %p97 = scmp.ne.s32.totalorder %s89, %s92
    %p98 = scmp.eq.s32.totalorder %s13, 0
    %p99 = por %p97, %p98
    %p100 = scmp.ne.s32.totalorder %s89, %s92
    %p101 = scmp.eq.s32.totalorder %s18, 1
    %p102 = por %p100, %p101
    %p103 = scmp.ne.s32.totalorder %s92, %s93
    %p104 = scmp.eq.s32.totalorder %s18, 0
    %p105 = por %p103, %p104
    %p106 = scmp.ne.s32.totalorder %s92, %s93
    %p107 = scmp.eq.s32.totalorder %s19, 1
    %p108 = por %p106, %p107
    %p110 = scmp.ne.s32.totalorder %s93, %s109
    %p111 = scmp.eq.s32.totalorder %s19, 0
    %p112 = por %p110, %p111
    %s113 = ssub.s32 %s20, %s32
    %p114 = scmp.eq.s32.totalorder %s113, 0
    %s116 = sadd.s32 %s115, 1
    %s117 = scalar_select %p114, %s115, %s116
    %p120 = pneg %p114
    %p121 = scmp.eq.s32.totalorder %s13, 1
    %p122 = por %p120, %p121
    %p123 = scmp.ne.s32.totalorder %s115, %s118
    %p124 = scmp.eq.s32.totalorder %s13, 0
    %p125 = por %p123, %p124
    %p126 = scmp.ne.s32.totalorder %s115, %s118
    %p127 = scmp.eq.s32.totalorder %s18, 1
    %p128 = por %p126, %p127
    %p129 = scmp.ne.s32.totalorder %s118, %s119
    %p130 = scmp.eq.s32.totalorder %s18, 0
    %p131 = por %p129, %p130
    %p132 = scmp.ne.s32.totalorder %s118, %s119
    %p133 = scmp.eq.s32.totalorder %s19, 1
    %p134 = por %p132, %p133
    %p136 = scmp.ne.s32.totalorder %s119, %s135
    %p137 = scmp.eq.s32.totalorder %s19, 0
    %p138 = por %p136, %p137
    %s139 = ssub.s32 %s20, %s32
    %p140 = scmp.eq.s32.totalorder %s139, 0
    %s142 = sadd.s32 %s141, 1
    %s143 = scalar_select %p140, %s141, %s142
    %p146 = pneg %p140
    %p147 = scmp.eq.s32.totalorder %s13, 1
    %p148 = por %p146, %p147
    %p149 = scmp.ne.s32.totalorder %s141, %s144
    %p150 = scmp.eq.s32.totalorder %s13, 0
    %p151 = por %p149, %p150
    %p152 = scmp.ne.s32.totalorder %s141, %s144
    %p153 = scmp.eq.s32.totalorder %s18, 1
    %p154 = por %p152, %p153
    %p155 = scmp.ne.s32.totalorder %s144, %s145
    %p156 = scmp.eq.s32.totalorder %s18, 0
    %p157 = por %p155, %p156
    %p158 = scmp.ne.s32.totalorder %s144, %s145
    %p159 = scmp.eq.s32.totalorder %s19, 1
    %p160 = por %p158, %p159
    %p162 = scmp.ne.s32.totalorder %s145, %s161
    %p163 = scmp.eq.s32.totalorder %s19, 0
    %p164 = por %p162, %p163
    %s165 = ssub.s32 %s20, %s32
    %p166 = scmp.eq.s32.totalorder %s165, 0
    %s168 = sadd.s32 %s167, 1
    %s169 = scalar_select %p166, %s167, %s168
    %p172 = pneg %p166
    %p173 = scmp.eq.s32.totalorder %s13, 1
    %p174 = por %p172, %p173
    %p175 = scmp.ne.s32.totalorder %s167, %s170
    %p176 = scmp.eq.s32.totalorder %s13, 0
    %p177 = por %p175, %p176
    %p178 = scmp.ne.s32.totalorder %s167, %s170
    %p179 = scmp.eq.s32.totalorder %s18, 1
    %p180 = por %p178, %p179
    %p181 = scmp.ne.s32.totalorder %s170, %s171
    %p182 = scmp.eq.s32.totalorder %s18, 0
    %p183 = por %p181, %p182
    %p184 = scmp.ne.s32.totalorder %s170, %s171
    %p185 = scmp.eq.s32.totalorder %s19, 1
    %p186 = por %p184, %p185
    %p188 = scmp.ne.s32.totalorder %s171, %s187
    %p189 = scmp.eq.s32.totalorder %s19, 0
    %p190 = por %p188, %p189
    %s191 = ssub.s32 %s20, %s32
    %p192 = scmp.eq.s32.totalorder %s191, 0
    %s194 = sadd.s32 %s193, 1
    %s195 = scalar_select %p192, %s193, %s194
    %p198 = pneg %p192
    %p199 = scmp.eq.s32.totalorder %s13, 1
    %p200 = por %p198, %p199
    %p201 = scmp.ne.s32.totalorder %s193, %s196
    %p202 = scmp.eq.s32.totalorder %s13, 0
    %p203 = por %p201, %p202
    %p204 = scmp.ne.s32.totalorder %s193, %s196
    %p205 = scmp.eq.s32.totalorder %s18, 1
    %p206 = por %p204, %p205
    %p207 = scmp.ne.s32.totalorder %s196, %s197
    %p208 = scmp.eq.s32.totalorder %s18, 0
    %p209 = por %p207, %p208
    %p210 = scmp.ne.s32.totalorder %s196, %s197
    %p211 = scmp.eq.s32.totalorder %s19, 1
    %p212 = por %p210, %p211
    %p214 = scmp.ne.s32.totalorder %s197, %s213
    %p215 = scmp.eq.s32.totalorder %s19, 0
    %p216 = por %p214, %p215
    %s217 = ssub.s32 %s20, %s32
    %s218 = ssub.s32 %s21, %s28
    %s219 = sor.u32 %s217, %s218
    %p220 = scmp.eq.s32.totalorder %s219, 0
    %s222 = sadd.s32 %s221, 1
    %s223 = scalar_select %p220, %s221, %s222
    %p226 = pneg %p220
    %p227 = scmp.eq.s32.totalorder %s13, 1
    %p228 = por %p226, %p227
    %p229 = scmp.ne.s32.totalorder %s221, %s224
    %p230 = scmp.eq.s32.totalorder %s13, 0
    %p231 = por %p229, %p230
    %p232 = scmp.ne.s32.totalorder %s221, %s224
    %p233 = scmp.eq.s32.totalorder %s18, 1
    %p234 = por %p232, %p233
    %p235 = scmp.ne.s32.totalorder %s224, %s225
    %p236 = scmp.eq.s32.totalorder %s18, 0
    %p237 = por %p235, %p236
    %p238 = scmp.ne.s32.totalorder %s224, %s225
    %p239 = scmp.eq.s32.totalorder %s19, 1
    %p240 = por %p238, %p239
    %p242 = scmp.ne.s32.totalorder %s225, %s241
    %p243 = scmp.eq.s32.totalorder %s19, 0
    %p244 = por %p242, %p243
    %p245 = scmp.le.s32.totalorder 1, %s13
    %p246 = scmp.lt.s32.totalorder %s13, 3
    %p247 = pnand %p245, %p246
    %p248 = pneg %p247
    // Predicated region
    $region9: #{tpu_custom_call.1} parent=5 // pred_check
      _
    $region10: #{tpu_custom_call.1} parent=5 // pred_check_branch
      %250 = sbr.rel (%p247) target = $region12
    $region11: #{tpu_custom_call.1} parent=5 // pred_region
      %s251 = ssub.s32 %s13, 1
    $region12: #{tpu_custom_call.1} parent=5 // pred_fallthru
      _
    %p252 = scmp.lt.s32.totalorder %s13, 2
    // Predicated region
    $region13: #{tpu_custom_call.1} parent=5 // pred_check
      %p253 = pneg %p252
    $region14: #{tpu_custom_call.1} parent=5 // pred_check_branch
      %255 = sbr.rel (%p253) target = $region16
    $region15: #{tpu_custom_call.1} parent=5 // pred_region
      // Predicated region
      $region17: #{tpu_custom_call.1} parent=15 // pred_check
        %p256 = pneg %p47
      $region18: #{tpu_custom_call.1} parent=15 // pred_check_branch
        %258 = sbr.rel (%p256) target = $region20
      $region19: #{tpu_custom_call.1} parent=15 // pred_region
        %s259 = smul.u32 2, %s21
        %p260 = scmp.lt.s32.totalorder %s20, 1
        %s261 = scalar_select %p260, %s20, 1
        %p262 = scmp.lt.s32.totalorder %s259, 1
        %s263 = scalar_select %p262, %s259, 1
        %s264 = smul.addr %s261, 2
        %s265 = sadd.s32 %s263, %s264
        %s266 = smul.addr %s265, 4
        %s267 = scalar_lea.vmem %s0, %s266
        %s268 = smul.u32 2, %s21
      $region20: #{tpu_custom_call.1} parent=15 // pred_fallthru
        _
      // Predicated region
      $region21: #{tpu_custom_call.1} parent=15 // pred_check
        %p269 = pneg %p73
      $region22: #{tpu_custom_call.1} parent=15 // pred_check_branch
        %271 = sbr.rel (%p269) target = $region24
      $region23: #{tpu_custom_call.1} parent=15 // pred_region
        %p272 = scmp.lt.s32.totalorder %s20, 1
        %s273 = scalar_select %p272, %s20, 1
        %s274 = smul.addr %s273, 8
        %s275 = smul.addr %s274, 8
        %s276 = scalar_lea.vmem %s1, %s275
      $region24: #{tpu_custom_call.1} parent=15 // pred_fallthru
        _
      // Predicated region
      $region25: #{tpu_custom_call.1} parent=15 // pred_check
        %p277 = pneg %p99
      $region26: #{tpu_custom_call.1} parent=15 // pred_check_branch
        %279 = sbr.rel (%p277) target = $region28
      $region27: #{tpu_custom_call.1} parent=15 // pred_region
        %p280 = scmp.lt.s32.totalorder %s20, 1
        %s281 = scalar_select %p280, %s20, 1
        %s282 = smul.addr %s281, 8
        %s283 = smul.addr %s282, 8
        %s284 = scalar_lea.vmem %s2, %s283
      $region28: #{tpu_custom_call.1} parent=15 // pred_fallthru
        _
      // Predicated region
      $region29: #{tpu_custom_call.1} parent=15 // pred_check
        %p285 = pneg %p125
      $region30: #{tpu_custom_call.1} parent=15 // pred_check_branch
        %287 = sbr.rel (%p285) target = $region32
      $region31: #{tpu_custom_call.1} parent=15 // pred_region
        %p288 = scmp.lt.s32.totalorder %s20, 1
        %s289 = scalar_select %p288, %s20, 1
        %s290 = smul.addr %s289, 8
        %s291 = smul.addr %s290, 8
        %s292 = scalar_lea.vmem %s3, %s291
      $region32: #{tpu_custom_call.1} parent=15 // pred_fallthru
        _
      // Predicated region
      $region33: #{tpu_custom_call.1} parent=15 // pred_check
        %p293 = pneg %p151
      $region34: #{tpu_custom_call.1} parent=15 // pred_check_branch
        %295 = sbr.rel (%p293) target = $region36
      $region35: #{tpu_custom_call.1} parent=15 // pred_region
        %p296 = scmp.lt.s32.totalorder %s20, 1
        %s297 = scalar_select %p296, %s20, 1
        %s298 = smul.addr %s297, 8
        %s299 = smul.addr %s298, 8
        %s300 = scalar_lea.vmem %s4, %s299
      $region36: #{tpu_custom_call.1} parent=15 // pred_fallthru
        _
      // Predicated region
      $region37: #{tpu_custom_call.1} parent=15 // pred_check
        %p301 = pneg %p177
      $region38: #{tpu_custom_call.1} parent=15 // pred_check_branch
        %303 = sbr.rel (%p301) target = $region40
      $region39: #{tpu_custom_call.1} parent=15 // pred_region
        %p304 = scmp.lt.s32.totalorder %s20, 1
        %s305 = scalar_select %p304, %s20, 1
        %s306 = smul.addr %s305, 4
        %s307 = scalar_lea.vmem %s5, %s306
      $region40: #{tpu_custom_call.1} parent=15 // pred_fallthru
        _
      // Predicated region
      $region41: #{tpu_custom_call.1} parent=15 // pred_check
        %p308 = pneg %p203
      $region42: #{tpu_custom_call.1} parent=15 // pred_check_branch
        %310 = sbr.rel (%p308) target = $region44
      $region43: #{tpu_custom_call.1} parent=15 // pred_region
        %p311 = scmp.lt.s32.totalorder %s20, 1
        %s312 = scalar_select %p311, %s20, 1
        %s313 = smul.addr %s312, 4
        %s314 = scalar_lea.vmem %s6, %s313
      $region44: #{tpu_custom_call.1} parent=15 // pred_fallthru
        _
    $region16: #{tpu_custom_call.1} parent=5 // pred_fallthru
      _
    %p315 = scmp.le.s32.totalorder 1, %s13
    %p316 = scmp.lt.s32.totalorder %s13, 3
    %p317 = pnand %p315, %p316
    %p318 = pneg %p317
    // Predicated region
    $region45: #{tpu_custom_call.1} parent=5 // pred_check
      _
    $region46: #{tpu_custom_call.1} parent=5 // pred_check_branch
      %320 = sbr.rel (%p317) target = $region48
    $region47: #{tpu_custom_call.1} parent=5 // pred_region
      %s321 = ssub.s32 %s13, 1
      %s322 = smul.u32 2, %s23
      %p323 = scmp.lt.s32.totalorder %s22, 1
      %s324 = scalar_select %p323, %s22, 1
      %p325 = scmp.lt.s32.totalorder %s322, 1
      %s326 = scalar_select %p325, %s322, 1
      %s327 = smul.addr %s324, 2
      %s328 = sadd.s32 %s326, %s327
      %s329 = smul.addr %s328, 4
      %s330 = scalar_lea.vmem %s0, %s329
      %p331 = pneg %p53
      %p332 = pneg %p50
      %p333 = scmp.lt.s32.totalorder %s22, 1
      %s334 = scalar_select %p333, %s22, 1
      %s335 = smul.addr %s334, 8
      %s336 = smul.addr %s335, 8
      %s337 = scalar_lea.vmem %s1, %s336
      %p338 = pneg %p79
      %p339 = pneg %p76
      %p340 = scmp.lt.s32.totalorder %s22, 1
      %s341 = scalar_select %p340, %s22, 1
      %s342 = smul.addr %s341, 8
      %s343 = smul.addr %s342, 8
      %s344 = scalar_lea.vmem %s2, %s343
      %p345 = pneg %p105
      %p346 = pneg %p102
      %p347 = scmp.lt.s32.totalorder %s22, 1
      %s348 = scalar_select %p347, %s22, 1
      %s349 = smul.addr %s348, 8
      %s350 = smul.addr %s349, 8
      %s351 = scalar_lea.vmem %s3, %s350
      %p352 = pneg %p131
      %p353 = pneg %p128
      %p354 = scmp.lt.s32.totalorder %s22, 1
      %s355 = scalar_select %p354, %s22, 1
      %s356 = smul.addr %s355, 8
      %s357 = smul.addr %s356, 8
      %s358 = scalar_lea.vmem %s4, %s357
      %p359 = pneg %p157
      %p360 = pneg %p154
      %p361 = scmp.lt.s32.totalorder %s22, 1
      %s362 = scalar_select %p361, %s22, 1
      %s363 = smul.addr %s362, 4
      %s364 = scalar_lea.vmem %s5, %s363
      %p365 = pneg %p183
      %p366 = pneg %p180
      %p367 = scmp.lt.s32.totalorder %s22, 1
      %s368 = scalar_select %p367, %s22, 1
      %s369 = smul.addr %s368, 4
      %s370 = scalar_lea.vmem %s6, %s369
      %p371 = pneg %p209
      %p372 = pneg %p206
      %p373 = pneg %p237
      %p374 = pneg %p234
      %s375 = smul.u32 2, %s23
      %p376 = scmp.lt.s32.totalorder %s22, 1
      %s377 = scalar_select %p376, %s22, 1
      %p378 = scmp.lt.s32.totalorder %s375, 1
      %s379 = scalar_select %p378, %s375, 1
      %s380 = smul.addr %s377, 2
      %s381 = sadd.s32 %s379, %s380
      %s382 = smul.addr %s381, 4
      %s383 = scalar_lea.vmem %s7, %s382
      %s384 = smul.u32 2, %s23
      %p385 = scmp.lt.s32.totalorder %s22, 1
      %s386 = scalar_select %p385, %s22, 1
      %p387 = scmp.lt.s32.totalorder %s384, 1
      %s388 = scalar_select %p387, %s384, 1
      %s389 = smul.addr %s386, 2
      %s390 = sadd.s32 %s388, %s389
      %s391 = smul.addr %s390, 4
      %s392 = scalar_lea.vmem %s0, %s391
      %s393 = smul.u32 2, %s23
      %p394 = scmp.lt.s32.totalorder %s22, 1
      %s395 = scalar_select %p394, %s22, 1
      %s396 = smul.addr %s395, 8
      %s397 = smul.addr %s396, 8
      %s398 = scalar_lea.vmem %s1, %s397
      %p399 = scmp.lt.s32.totalorder %s22, 1
      %s400 = scalar_select %p399, %s22, 1
      %s401 = smul.addr %s400, 8
      %s402 = smul.addr %s401, 8
      %s403 = scalar_lea.vmem %s2, %s402
      %p404 = scmp.lt.s32.totalorder %s22, 1
      %s405 = scalar_select %p404, %s22, 1
      %s406 = smul.addr %s405, 8
      %s407 = smul.addr %s406, 8
      %s408 = scalar_lea.vmem %s3, %s407
      %p409 = scmp.lt.s32.totalorder %s22, 1
      %s410 = scalar_select %p409, %s22, 1
      %s411 = smul.addr %s410, 8
      %s412 = smul.addr %s411, 8
      %s413 = scalar_lea.vmem %s4, %s412
      %p414 = scmp.lt.s32.totalorder %s22, 1
      %s415 = scalar_select %p414, %s22, 1
      %s416 = smul.addr %s415, 4
      %s417 = scalar_lea.vmem %s5, %s416
      %p418 = scmp.lt.s32.totalorder %s22, 1
      %s419 = scalar_select %p418, %s22, 1
      %s420 = smul.addr %s419, 4
      %s421 = scalar_lea.vmem %s6, %s420
      %s422 = smul.u32 2, %s23
      %p423 = scmp.lt.s32.totalorder %s22, 1
      %s424 = scalar_select %p423, %s22, 1
      %p425 = scmp.lt.s32.totalorder %s422, 1
      %s426 = scalar_select %p425, %s422, 1
      %s427 = smul.addr %s424, 2
      %s428 = sadd.s32 %s426, %s427
      %s429 = smul.addr %s428, 4
      %s430 = scalar_lea.vmem %s7, %s429
      %s431 = smul.u32 2, %s23
      %v432 = vld [vmem:[%s398] sm:$0xff]
      %v433 = vld [vmem:[%s398 + $0x8] sm:$0xff]
      %v434 = vld [vmem:[%s398 + $0x10] sm:$0xff]
      %v435 = vld [vmem:[%s398 + $0x18] sm:$0xff]
      %v436 = vld [vmem:[%s398 + $0x20] sm:$0xff]
      %v437 = vld [vmem:[%s398 + $0x28] sm:$0xff]
      %v438 = vld [vmem:[%s398 + $0x30] sm:$0xff]
      %v439 = vld [vmem:[%s398 + $0x38] sm:$0xff]
      %v440 = vld [vmem:[%s403] sm:$0xff]
      %v441 = vld [vmem:[%s403 + $0x8] sm:$0xff]
      %v442 = vld [vmem:[%s403 + $0x10] sm:$0xff]
      %v443 = vld [vmem:[%s403 + $0x18] sm:$0xff]
      %v444 = vld [vmem:[%s403 + $0x20] sm:$0xff]
      %v445 = vld [vmem:[%s403 + $0x28] sm:$0xff]
      %v446 = vld [vmem:[%s403 + $0x30] sm:$0xff]
      %v447 = vld [vmem:[%s403 + $0x38] sm:$0xff]
      %v448 = vld [vmem:[%s408] sm:$0xff]
      %v449 = vld [vmem:[%s408 + $0x8] sm:$0xff]
      %v450 = vld [vmem:[%s408 + $0x10] sm:$0xff]
      %v451 = vld [vmem:[%s408 + $0x18] sm:$0xff]
      %v452 = vld [vmem:[%s408 + $0x20] sm:$0xff]
      %v453 = vld [vmem:[%s408 + $0x28] sm:$0xff]
      %v454 = vld [vmem:[%s408 + $0x30] sm:$0xff]
      %v455 = vld [vmem:[%s408 + $0x38] sm:$0xff]
      %v456 = vld [vmem:[%s413] sm:$0xff]
      %v457 = vld [vmem:[%s413 + $0x8] sm:$0xff]
      %v458 = vld [vmem:[%s413 + $0x10] sm:$0xff]
      %v459 = vld [vmem:[%s413 + $0x18] sm:$0xff]
      %v460 = vld [vmem:[%s413 + $0x20] sm:$0xff]
      %v461 = vld [vmem:[%s413 + $0x28] sm:$0xff]
      %v462 = vld [vmem:[%s413 + $0x30] sm:$0xff]
      %v463 = vld [vmem:[%s413 + $0x38] sm:$0xff]
      %v464 = vld [vmem:[%s417] sm:$0x7]
      %v465 = vld [vmem:[%s421] sm:$0x7]
      %v466 = vld [vmem:[%s392] sm:$0x77]
      %468 = vset.pattern.permute.xlu0 0
      %469 = vperm.xlu0 %468, %v440
      %v470 = vpop.permute.xlu0 %469
      %473 = vset.pattern.permute.xlu0 0
      %474 = vperm.xlu0 %473, %v441
      %v475 = vpop.permute.xlu0 %474
      %478 = vset.pattern.permute.xlu0 0
      %479 = vperm.xlu0 %478, %v442
      %v480 = vpop.permute.xlu0 %479
      %483 = vset.pattern.permute.xlu0 0
      %484 = vperm.xlu0 %483, %v443
      %v485 = vpop.permute.xlu0 %484
      %488 = vset.pattern.permute.xlu0 0
      %489 = vperm.xlu0 %488, %v444
      %v490 = vpop.permute.xlu0 %489
      %493 = vset.pattern.permute.xlu0 0
      %494 = vperm.xlu0 %493, %v445
      %v495 = vpop.permute.xlu0 %494
      %498 = vset.pattern.permute.xlu0 0
      %499 = vperm.xlu0 %498, %v446
      %v500 = vpop.permute.xlu0 %499
      %503 = vset.pattern.permute.xlu0 0
      %504 = vperm.xlu0 %503, %v447
      %v505 = vpop.permute.xlu0 %504
      %v508 = vcombine.high %v466, %v466
      %vm509 = vcmask 23552
      %v511 = vsel %vm509, %v432, 0
      %v514 = vsel %vm509, %v433, 0
      %v517 = vsel %vm509, %v434, 0
      %v520 = vsel %vm509, %v435, 0
      %v523 = vsel %vm509, %v436, 0
      %v526 = vsel %vm509, %v437, 0
      %v529 = vsel %vm509, %v438, 0
      %v532 = vsel %vm509, %v439, 0
      %vm534 = vcmask 1042432
      %v535 = vsel %vm534, %v466, 0
      %v537 = vsel %vm534, %v508, 0
      %539 = vmatprep.subr.mxu0 0.0
      %540 = vmatpush1.msra.mxu0 0.0
      %541 = vmatprep.subr.mxu0 0.0
      %542 = vmatpush1.msra.mxu0 0.0
      %543 = vmatprep.subr.mxu0 0.0
      %544 = vmatpush1.msra.mxu0 0.0
      %545 = vmatprep.subr.mxu0 0.0
      %546 = vmatpush1.msra.mxu0 0.0
      %547 = vmatprep.subr.mxu0 0.0
      %548 = vmatpush1.msra.mxu0 0.0
      %549 = vmatprep.subr.mxu0 0.0
      %550 = vmatpush1.msra.mxu0 0.0
      %551 = vmatprep.subr.mxu0 0.0
      %552 = vmatpush1.msra.mxu0 0.0
      %553 = vmatprep.subr.mxu0 0.0
      %554 = vmatpush1.msra.mxu0 0.0
      %555 = vmatprep.subr.mxu0 0.0
      %556 = vmatpush1.msra.mxu0 0.0
      %557 = vmatprep.subr.mxu0 0.0
      %558 = vmatpush1.msra.mxu0 0.0
      %559 = vmatprep.subr.mxu0 0.0
      %560 = vmatpush1.msra.mxu0 0.0
      %561 = vmatprep.subr.mxu0 0.0
      %562 = vmatpush1.msra.mxu0 0.0
      %563 = vmatprep.subr.mxu0 0.0
      %564 = vmatpush1.msra.mxu0 0.0
      %565 = vmatprep.subr.mxu0 0.0
      %566 = vmatpush1.msra.mxu0 0.0
      %567 = vmatprep.subr.mxu0 0.0
      %568 = vmatpush1.msra.mxu0 0.0
      %569 = vmatprep.subr.mxu0 %v537
      %570 = vmatpush1.msra.mxu0 %v535
      %571 = vmatprep.subr.mxu0 0.0
      %572 = vmatpush2.msra.mxu0 0.0
      %573 = vmatprep.subr.mxu0 0.0
      %574 = vmatpush2.msra.mxu0 0.0
      %575 = vmatprep.subr.mxu0 0.0
      %576 = vmatpush2.msra.mxu0 0.0
      %577 = vmatprep.subr.mxu0 0.0
      %578 = vmatpush2.msra.mxu0 0.0
      %579 = vmatprep.subr.mxu0 0.0
      %580 = vmatpush2.msra.mxu0 0.0
      %581 = vmatprep.subr.mxu0 0.0
      %582 = vmatpush2.msra.mxu0 0.0
      %583 = vmatprep.subr.mxu0 0.0
      %584 = vmatpush2.msra.mxu0 0.0
      %585 = vmatprep.subr.mxu0 0.0
      %586 = vmatpush2.msra.mxu0 0.0
      %587 = vmatprep.subr.mxu0 0.0
      %588 = vmatpush2.msra.mxu0 0.0
      %589 = vmatprep.subr.mxu0 0.0
      %590 = vmatpush2.msra.mxu0 0.0
      %591 = vmatprep.subr.mxu0 0.0
      %592 = vmatpush2.msra.mxu0 0.0
      %593 = vmatprep.subr.mxu0 0.0
      %594 = vmatpush2.msra.mxu0 0.0
      %595 = vmatprep.subr.mxu0 0.0
      %596 = vmatpush2.msra.mxu0 0.0
      %597 = vmatprep.subr.mxu0 0.0
      %598 = vmatpush2.msra.mxu0 0.0
      %599 = vmatprep.subr.mxu0 0.0
      %600 = vmatpush2.msra.mxu0 0.0
      %601 = vmatprep.subr.mxu0 0.0
      %602 = vmatpush2.msra.mxu0 0.0
      %603 = vmatprep.mubr.f32.mxu0 0.0
      %604 = vmatmul.mubr.f32.gmra.mxu0 %v511
      %v605 = vpop.f32.mrf.mxu0
      %v606 = vadd.f32 %v470, %v605
      %v607 = vpop.f32.mrf.mxu0
      %v608 = vadd.f32 %v470, %v607
      %609 = vmatprep.mubr.f32.mxu0 0.0
      %610 = vmatmul.mubr.f32.gmra.mxu0 %v514
      %v611 = vpop.f32.mrf.mxu0
      %v612 = vadd.f32 %v475, %v611
      %v613 = vpop.f32.mrf.mxu0
      %v614 = vadd.f32 %v475, %v613
      %615 = vmatprep.mubr.f32.mxu0 0.0
      %616 = vmatmul.mubr.f32.gmra.mxu0 %v517
      %v617 = vpop.f32.mrf.mxu0
      %v618 = vadd.f32 %v480, %v617
      %v619 = vpop.f32.mrf.mxu0
      %v620 = vadd.f32 %v480, %v619
      %621 = vmatprep.mubr.f32.mxu0 0.0
      %622 = vmatmul.mubr.f32.gmra.mxu0 %v520
      %v623 = vpop.f32.mrf.mxu0
      %v624 = vadd.f32 %v485, %v623
      %v625 = vpop.f32.mrf.mxu0
      %v626 = vadd.f32 %v485, %v625
      %627 = vmatprep.mubr.f32.mxu0 0.0
      %628 = vmatmul.mubr.f32.gmra.mxu0 %v523
      %v629 = vpop.f32.mrf.mxu0
      %v630 = vadd.f32 %v490, %v629
      %v631 = vpop.f32.mrf.mxu0
      %v632 = vadd.f32 %v490, %v631
      %633 = vmatprep.mubr.f32.mxu0 0.0
      %634 = vmatmul.mubr.f32.gmra.mxu0 %v526
      %v635 = vpop.f32.mrf.mxu0
      %v636 = vadd.f32 %v495, %v635
      %v637 = vpop.f32.mrf.mxu0
      %v638 = vadd.f32 %v495, %v637
      %639 = vmatprep.mubr.f32.mxu0 0.0
      %640 = vmatmul.mubr.f32.gmra.mxu0 %v529
      %v641 = vpop.f32.mrf.mxu0
      %v642 = vadd.f32 %v500, %v641
      %v643 = vpop.f32.mrf.mxu0
      %v644 = vadd.f32 %v500, %v643
      %645 = vmatprep.mubr.f32.mxu0 0.0
      %646 = vmatmul.mubr.f32.gmra.mxu0 %v532
      %v647 = vpop.f32.mrf.mxu0
      %v648 = vadd.f32 %v505, %v647
      %v649 = vpop.f32.mrf.mxu0
      %v650 = vadd.f32 %v505, %v649
      %651 = vdwg.mxu0
      %v652 = vmax.f32 %v606, 0.0
      %v653 = vmax.f32 %v608, 0.0
      %v654 = vmax.f32 %v612, 0.0
      %v655 = vmax.f32 %v614, 0.0
      %v656 = vmax.f32 %v618, 0.0
      %v657 = vmax.f32 %v620, 0.0
      %v658 = vmax.f32 %v624, 0.0
      %v659 = vmax.f32 %v626, 0.0
      %v660 = vmax.f32 %v630, 0.0
      %v661 = vmax.f32 %v632, 0.0
      %v662 = vmax.f32 %v636, 0.0
      %v663 = vmax.f32 %v638, 0.0
      %v664 = vmax.f32 %v642, 0.0
      %v665 = vmax.f32 %v644, 0.0
      %v666 = vmax.f32 %v648, 0.0
      %v667 = vmax.f32 %v650, 0.0
      %669 = vset.pattern.permute.xlu0 0
      %670 = vperm.xlu0 %669, %v456
      %v671 = vpop.permute.xlu0 %670
      %674 = vset.pattern.permute.xlu0 0
      %675 = vperm.xlu0 %674, %v457
      %v676 = vpop.permute.xlu0 %675
      %679 = vset.pattern.permute.xlu0 0
      %680 = vperm.xlu0 %679, %v458
      %v681 = vpop.permute.xlu0 %680
      %684 = vset.pattern.permute.xlu0 0
      %685 = vperm.xlu0 %684, %v459
      %v686 = vpop.permute.xlu0 %685
      %689 = vset.pattern.permute.xlu0 0
      %690 = vperm.xlu0 %689, %v460
      %v691 = vpop.permute.xlu0 %690
      %694 = vset.pattern.permute.xlu0 0
      %695 = vperm.xlu0 %694, %v461
      %v696 = vpop.permute.xlu0 %695
      %699 = vset.pattern.permute.xlu0 0
      %700 = vperm.xlu0 %699, %v462
      %v701 = vpop.permute.xlu0 %700
      %704 = vset.pattern.permute.xlu0 0
      %705 = vperm.xlu0 %704, %v463
      %v706 = vpop.permute.xlu0 %705
      %vm708 = vcmask 523264
      %v710 = vsel %vm708, %v448, 0
      %v713 = vsel %vm708, %v449, 0
      %v716 = vsel %vm708, %v450, 0
      %v719 = vsel %vm708, %v451, 0
      %v722 = vsel %vm708, %v452, 0
      %v725 = vsel %vm708, %v453, 0
      %v728 = vsel %vm708, %v454, 0
      %v731 = vsel %vm708, %v455, 0
      %733 = vmatprep.subr.mxu0 0.0
      %734 = vmatpush1.msra.mxu0 0.0
      %735 = vmatprep.subr.mxu0 0.0
      %736 = vmatpush1.msra.mxu0 0.0
      %737 = vmatprep.subr.mxu0 0.0
      %738 = vmatpush1.msra.mxu0 0.0
      %739 = vmatprep.subr.mxu0 0.0
      %740 = vmatpush1.msra.mxu0 0.0
      %741 = vmatprep.subr.mxu0 0.0
      %742 = vmatpush1.msra.mxu0 0.0
      %743 = vmatprep.subr.mxu0 0.0
      %744 = vmatpush1.msra.mxu0 0.0
      %745 = vmatprep.subr.mxu0 0.0
      %746 = vmatpush1.msra.mxu0 0.0
      %747 = vmatprep.subr.mxu0 0.0
      %748 = vmatpush1.msra.mxu0 0.0
      %749 = vmatprep.subr.mxu0 %v667
      %750 = vmatpush1.msra.mxu0 %v666
      %751 = vmatprep.subr.mxu0 %v665
      %752 = vmatpush1.msra.mxu0 %v664
      %753 = vmatprep.subr.mxu0 %v663
      %754 = vmatpush1.msra.mxu0 %v662
      %755 = vmatprep.subr.mxu0 %v661
      %756 = vmatpush1.msra.mxu0 %v660
      %757 = vmatprep.subr.mxu0 %v659
      %758 = vmatpush1.msra.mxu0 %v658
      %759 = vmatprep.subr.mxu0 %v657
      %760 = vmatpush1.msra.mxu0 %v656
      %761 = vmatprep.subr.mxu0 %v655
      %762 = vmatpush1.msra.mxu0 %v654
      %763 = vmatprep.subr.mxu0 %v653
      %764 = vmatpush1.msra.mxu0 %v652
      %765 = vmatprep.subr.mxu0 0.0
      %766 = vmatpush2.msra.mxu0 0.0
      %767 = vmatprep.subr.mxu0 0.0
      %768 = vmatpush2.msra.mxu0 0.0
      %769 = vmatprep.subr.mxu0 0.0
      %770 = vmatpush2.msra.mxu0 0.0
      %771 = vmatprep.subr.mxu0 0.0
      %772 = vmatpush2.msra.mxu0 0.0
      %773 = vmatprep.subr.mxu0 0.0
      %774 = vmatpush2.msra.mxu0 0.0
      %775 = vmatprep.subr.mxu0 0.0
      %776 = vmatpush2.msra.mxu0 0.0
      %777 = vmatprep.subr.mxu0 0.0
      %778 = vmatpush2.msra.mxu0 0.0
      %779 = vmatprep.subr.mxu0 0.0
      %780 = vmatpush2.msra.mxu0 0.0
      %781 = vmatprep.subr.mxu0 0.0
      %782 = vmatpush2.msra.mxu0 0.0
      %783 = vmatprep.subr.mxu0 0.0
      %784 = vmatpush2.msra.mxu0 0.0
      %785 = vmatprep.subr.mxu0 0.0
      %786 = vmatpush2.msra.mxu0 0.0
      %787 = vmatprep.subr.mxu0 0.0
      %788 = vmatpush2.msra.mxu0 0.0
      %789 = vmatprep.subr.mxu0 0.0
      %790 = vmatpush2.msra.mxu0 0.0
      %791 = vmatprep.subr.mxu0 0.0
      %792 = vmatpush2.msra.mxu0 0.0
      %793 = vmatprep.subr.mxu0 0.0
      %794 = vmatpush2.msra.mxu0 0.0
      %795 = vmatprep.subr.mxu0 0.0
      %796 = vmatpush2.msra.mxu0 0.0
      %797 = vmatprep.mubr.f32.mxu0 0.0
      %798 = vmatmul.mubr.f32.gmra.mxu0 %v710
      %v799 = vpop.f32.mrf.mxu0
      %v800 = vadd.f32 %v671, %v799
      %v801 = vpop.f32.mrf.mxu0
      %v802 = vadd.f32 %v671, %v801
      %803 = vmatprep.mubr.f32.mxu0 0.0
      %804 = vmatmul.mubr.f32.gmra.mxu0 %v713
      %v805 = vpop.f32.mrf.mxu0
      %v806 = vadd.f32 %v676, %v805
      %v807 = vpop.f32.mrf.mxu0
      %v808 = vadd.f32 %v676, %v807
      %809 = vmatprep.mubr.f32.mxu0 0.0
      %810 = vmatmul.mubr.f32.gmra.mxu0 %v716
      %v811 = vpop.f32.mrf.mxu0
      %v812 = vadd.f32 %v681, %v811
      %v813 = vpop.f32.mrf.mxu0
      %v814 = vadd.f32 %v681, %v813
      %815 = vmatprep.mubr.f32.mxu0 0.0
      %816 = vmatmul.mubr.f32.gmra.mxu0 %v719
      %v817 = vpop.f32.mrf.mxu0
      %v818 = vadd.f32 %v686, %v817
      %v819 = vpop.f32.mrf.mxu0
      %v820 = vadd.f32 %v686, %v819
      %821 = vmatprep.mubr.f32.mxu0 0.0
      %822 = vmatmul.mubr.f32.gmra.mxu0 %v722
      %v823 = vpop.f32.mrf.mxu0
      %v824 = vadd.f32 %v691, %v823
      %v825 = vpop.f32.mrf.mxu0
      %v826 = vadd.f32 %v691, %v825
      %827 = vmatprep.mubr.f32.mxu0 0.0
      %828 = vmatmul.mubr.f32.gmra.mxu0 %v725
      %v829 = vpop.f32.mrf.mxu0
      %v830 = vadd.f32 %v696, %v829
      %v831 = vpop.f32.mrf.mxu0
      %v832 = vadd.f32 %v696, %v831
      %833 = vmatprep.mubr.f32.mxu0 0.0
      %834 = vmatmul.mubr.f32.gmra.mxu0 %v728
      %v835 = vpop.f32.mrf.mxu0
      %v836 = vadd.f32 %v701, %v835
      %v837 = vpop.f32.mrf.mxu0
      %v838 = vadd.f32 %v701, %v837
      %839 = vmatprep.mubr.f32.mxu0 0.0
      %840 = vmatmul.mubr.f32.gmra.mxu0 %v731
      %v841 = vpop.f32.mrf.mxu0
      %v842 = vadd.f32 %v706, %v841
      %v843 = vpop.f32.mrf.mxu0
      %v844 = vadd.f32 %v706, %v843
      %845 = vdwg.mxu0
      %v846 = vmax.f32 %v800, 0.0
      %v847 = vmax.f32 %v802, 0.0
      %v848 = vmax.f32 %v806, 0.0
      %v849 = vmax.f32 %v808, 0.0
      %v850 = vmax.f32 %v812, 0.0
      %v851 = vmax.f32 %v814, 0.0
      %v852 = vmax.f32 %v818, 0.0
      %v853 = vmax.f32 %v820, 0.0
      %v854 = vmax.f32 %v824, 0.0
      %v855 = vmax.f32 %v826, 0.0
      %v856 = vmax.f32 %v830, 0.0
      %v857 = vmax.f32 %v832, 0.0
      %v858 = vmax.f32 %v836, 0.0
      %v859 = vmax.f32 %v838, 0.0
      %v860 = vmax.f32 %v842, 0.0
      %v861 = vmax.f32 %v844, 0.0
      %863 = vset.pattern.permute.xlu0 0
      %864 = vperm.xlu0 %863, %v465
      %v865 = vpop.permute.xlu0 %864
      %v868 = vsel %vm708, %v464, 0
      %870 = vmatprep.subr.mxu0 0.0
      %871 = vmatpush1.msra.mxu0 0.0
      %872 = vmatprep.subr.mxu0 0.0
      %873 = vmatpush1.msra.mxu0 0.0
      %874 = vmatprep.subr.mxu0 0.0
      %875 = vmatpush1.msra.mxu0 0.0
      %876 = vmatprep.subr.mxu0 0.0
      %877 = vmatpush1.msra.mxu0 0.0
      %878 = vmatprep.subr.mxu0 0.0
      %879 = vmatpush1.msra.mxu0 0.0
      %880 = vmatprep.subr.mxu0 0.0
      %881 = vmatpush1.msra.mxu0 0.0
      %882 = vmatprep.subr.mxu0 0.0
      %883 = vmatpush1.msra.mxu0 0.0
      %884 = vmatprep.subr.mxu0 0.0
      %885 = vmatpush1.msra.mxu0 0.0
      %886 = vmatprep.subr.mxu0 %v861
      %887 = vmatpush1.msra.mxu0 %v860
      %888 = vmatprep.subr.mxu0 %v859
      %889 = vmatpush1.msra.mxu0 %v858
      %890 = vmatprep.subr.mxu0 %v857
      %891 = vmatpush1.msra.mxu0 %v856
      %892 = vmatprep.subr.mxu0 %v855
      %893 = vmatpush1.msra.mxu0 %v854
      %894 = vmatprep.subr.mxu0 %v853
      %895 = vmatpush1.msra.mxu0 %v852
      %896 = vmatprep.subr.mxu0 %v851
      %897 = vmatpush1.msra.mxu0 %v850
      %898 = vmatprep.subr.mxu0 %v849
      %899 = vmatpush1.msra.mxu0 %v848
      %900 = vmatprep.subr.mxu0 %v847
      %901 = vmatpush1.msra.mxu0 %v846
      %902 = vmatprep.subr.mxu0 0.0
      %903 = vmatpush2.msra.mxu0 0.0
      %904 = vmatprep.subr.mxu0 0.0
      %905 = vmatpush2.msra.mxu0 0.0
      %906 = vmatprep.subr.mxu0 0.0
      %907 = vmatpush2.msra.mxu0 0.0
      %908 = vmatprep.subr.mxu0 0.0
      %909 = vmatpush2.msra.mxu0 0.0
      %910 = vmatprep.subr.mxu0 0.0
      %911 = vmatpush2.msra.mxu0 0.0
      %912 = vmatprep.subr.mxu0 0.0
      %913 = vmatpush2.msra.mxu0 0.0
      %914 = vmatprep.subr.mxu0 0.0
      %915 = vmatpush2.msra.mxu0 0.0
      %916 = vmatprep.subr.mxu0 0.0
      %917 = vmatpush2.msra.mxu0 0.0
      %918 = vmatprep.subr.mxu0 0.0
      %919 = vmatpush2.msra.mxu0 0.0
      %920 = vmatprep.subr.mxu0 0.0
      %921 = vmatpush2.msra.mxu0 0.0
      %922 = vmatprep.subr.mxu0 0.0
      %923 = vmatpush2.msra.mxu0 0.0
      %924 = vmatprep.subr.mxu0 0.0
      %925 = vmatpush2.msra.mxu0 0.0
      %926 = vmatprep.subr.mxu0 0.0
      %927 = vmatpush2.msra.mxu0 0.0
      %928 = vmatprep.subr.mxu0 0.0
      %929 = vmatpush2.msra.mxu0 0.0
      %930 = vmatprep.subr.mxu0 0.0
      %931 = vmatpush2.msra.mxu0 0.0
      %932 = vmatprep.subr.mxu0 0.0
      %933 = vmatpush2.msra.mxu0 0.0
      %934 = vmatprep.mubr.f32.mxu0 0.0
      %935 = vmatmul.mubr.f32.gmra.mxu0 %v868
      %v936 = vpop.f32.mrf.mxu0
      %v937 = vadd.f32 %v865, %v936
      %v938 = vpop.f32.mrf.mxu0
      %v939 = vadd.f32 %v865, %v938
      %940 = vdwg.mxu0
      %v943 = vcombine.low %v937, %v939
      %945 = vst [vmem:[%s430] sm:$0x77] %v943
      %s946 = smul.u32 2, %s23
      %p947 = scmp.lt.s32.totalorder %s22, 1
      %s948 = scalar_select %p947, %s22, 1
      %p949 = scmp.lt.s32.totalorder %s946, 1
      %s950 = scalar_select %p949, %s946, 1
      %s951 = smul.addr %s948, 2
      %s952 = sadd.s32 %s950, %s951
      %s953 = smul.addr %s952, 4
      %s954 = scalar_lea.vmem %s7, %s953
      // Predicated region
      $region49: #{tpu_custom_call.1} parent=47 // pred_check
        %p955 = pneg %p234
      $region50: #{tpu_custom_call.1} parent=47 // pred_check_branch
        %957 = sbr.rel (%p955) target = $region52
      $region51: #{tpu_custom_call.1} parent=47 // pred_region
        %s958 = smul.u32 2, %s23
      $region52: #{tpu_custom_call.1} parent=47 // pred_fallthru
        _
    $region48: #{tpu_custom_call.1} parent=5 // pred_fallthru
      _
    %p959 = scmp.le.s32.totalorder 2, %s13
    // Predicated region
    $region53: #{tpu_custom_call.1} parent=5 // pred_check
      %p960 = pneg %p959
    $region54: #{tpu_custom_call.1} parent=5 // pred_check_branch
      %962 = sbr.rel (%p960) target = $region56
    $region55: #{tpu_custom_call.1} parent=5 // pred_region
      %s963 = ssub.s32 %s13, 2
      // Predicated region
      $region57: #{tpu_custom_call.1} parent=55 // pred_check
        %p964 = pneg %p240
      $region58: #{tpu_custom_call.1} parent=55 // pred_check_branch
        %966 = sbr.rel (%p964) target = $region60
      $region59: #{tpu_custom_call.1} parent=55 // pred_region
        %s967 = smul.u32 2, %s25
        %p968 = scmp.lt.s32.totalorder %s24, 1
        %s969 = scalar_select %p968, %s24, 1
        %p970 = scmp.lt.s32.totalorder %s967, 1
        %s971 = scalar_select %p970, %s967, 1
        %s972 = smul.addr %s969, 2
        %s973 = sadd.s32 %s971, %s972
        %s974 = smul.addr %s973, 4
        %s975 = scalar_lea.vmem %s7, %s974
      $region60: #{tpu_custom_call.1} parent=55 // pred_fallthru
        _
    $region56: #{tpu_custom_call.1} parent=5 // pred_fallthru
      _
  $region6: #{tpu_custom_call.1} parent=0 // loop_footer
    %s17 = sadd.s32 1, %s13
  $region7: #{tpu_custom_call.1} parent=0 // loop_footer_branch
    %12 = sbr.rel target = $region3
  $region8: #{tpu_custom_call.1} parent=0 // loop_exit
    _

</llo_original>
